<compile_context>
chip_gen: v7x
topology: tpu7x:2x2x1
jax: 0.10.0
libtpu: 0.0.40
codegen_flags: <defaults>
</compile_context>

<pallas_src>
import functools

import jax
import jax.numpy as jnp
from jax.experimental import pallas as pl
from jax.experimental.pallas import tpu as pltpu

LANE = 128   # lane width: feature dims padded to 128 -> lane-dense loads/stores
ROW = 16     # bf16 packs 2 rows per sublane -> row tiles are multiples of 16


def _round_up(x, m):
    return (x + m - 1) // m * m


def _cdiv(a, b):
    return -(-a // b)


def _vmem_budget_bytes():
    """Per-core VMEM budget with ~20% headroom (v5e/v6e ~102 MiB, v7x ~51 MiB)."""
    cap = 64 * 1024 * 1024  # assume the smallest (v7x-sized) VMEM if query fails
    try:
        info = pltpu.get_tpu_info()
        cap = int(getattr(info, "vmem_capacity_bytes", cap))
    except Exception:
        pass
    return max(32 * 1024 * 1024, int(cap * 0.8))


# ----------------------------------------------------------------------------
# Kernels
# ----------------------------------------------------------------------------
def _mlp_fused_kernel(x_ref, w1_ref, b1_ref, w2_ref, b2_ref, o_ref):
    # Linear(in, hid): bf16 MXU matmul, f32 accumulation.
    h = jnp.dot(x_ref[...], w1_ref[...], preferred_element_type=jnp.float32)
    # bias-add + ReLU on the f32 accumulator (v5e has no bf16 VPU).
    h = jnp.maximum(h + b1_ref[...], 0.0)
    # Linear(hid, out): downcast activations to the weight dtype for the MXU.
    y = jnp.dot(h.astype(w2_ref.dtype), w2_ref[...],
                preferred_element_type=jnp.float32)
    o_ref[...] = (y + b2_ref[...]).astype(o_ref.dtype)


def _mlp_ktiled_kernel(x_ref, w1_ref, b1_ref, w2_ref, b2_ref, o_ref, acc_ref):
    # Grid = (row_block, k_block over F_hid); output block is invariant over k.
    k = pl.program_id(1)

    @pl.when(k == 0)
    def _():
        acc_ref[...] = jnp.zeros_like(acc_ref)

    h = jnp.dot(x_ref[...], w1_ref[...], preferred_element_type=jnp.float32)
    h = jnp.maximum(h + b1_ref[...], 0.0)              # exact: chunked over F_hid
    acc_ref[...] += jnp.dot(h.astype(w2_ref.dtype), w2_ref[...],
                            preferred_element_type=jnp.float32)

    @pl.when(k == pl.num_programs(1) - 1)
    def _():
        o_ref[...] = (acc_ref[...] + b2_ref[...]).astype(o_ref.dtype)


# ----------------------------------------------------------------------------
# Wrapper
# ----------------------------------------------------------------------------
def _pad_cast(a, rows, cols, dtype):
    a = a.astype(dtype)
    r, c = a.shape
    if (r, c) == (rows, cols):
        return a                                       # skip padding if aligned
    return jnp.zeros((rows, cols), dtype).at[:r, :c].set(a)


def _seq_mlp_impl(x, w1, b1, w2, b2, *, row_tile, compute_dtype, out_dtype,
                  k_tile, single_buffer_weights):
    N, F_in = x.shape
    F_in_w, F_hid = w1.shape
    F_hid_w, F_out = w2.shape
    assert F_in == F_in_w and F_hid == F_hid_w, "weight shapes inconsistent"
    b1 = b1.reshape(1, F_hid)
    b2 = b2.reshape(1, F_out)

    out_dtype = x.dtype if out_dtype is None else out_dtype
    budget = _vmem_budget_bytes()
    headroom = 2 * 1024 * 1024
    cb = jnp.dtype(compute_dtype).itemsize
    ob = jnp.dtype(out_dtype).itemsize

    F_in_p = _round_up(F_in, LANE)
    F_hid_p = _round_up(F_hid, LANE)
    F_out_p = _round_up(F_out, LANE)

    w_copies = 1 if single_buffer_weights else 2

    def _inv_spec(shape, index_map):
        # Grid-invariant operand: a single VMEM buffer is enough.
        if single_buffer_weights:
            return pl.BlockSpec(shape, index_map, pipeline_mode=pl.Buffered(1))
        return pl.BlockSpec(shape, index_map)

    # ---- row tile selection (multiples of 16, shrink only if VMEM-bound) ----
    rt = max(ROW, min(int(row_tile), _round_up(N, ROW)))
    rt = _round_up(rt, ROW)

    def fused_est(rt_):
        w = w_copies * ((F_in_p * F_hid_p + F_hid_p * F_out_p) * cb
                        + 8 * (F_hid_p + F_out_p) * 4)
        io = 2 * rt_ * (F_in_p * cb + F_out_p * ob)       # double-buffered x / out
        scratch = rt_ * (F_hid_p + F_out_p) * 4           # f32 hidden + epilogue
        return w + io + scratch + headroom

    use_k = k_tile is not None
    if not use_k:
        while rt > ROW and fused_est(rt) > budget:
            rt = max(ROW, _round_up(rt // 2, ROW))
        if fused_est(rt) > budget:
            # Resident weights dominate: shrinking rt cannot help -> K-tile F_hid.
            use_k = True
            rt = max(ROW, min(int(row_tile), _round_up(N, ROW)))

    tk = 0
    n_k = 1
    if use_k:
        base_hid = _round_up(F_hid, LANE)
        # >=256 wide contractions keep the 2x256^2 MXU on v6e/v7x full.
        tk = _round_up(int(k_tile), LANE) if k_tile is not None else min(512, base_hid)
        tk = min(tk, base_hid)

        def ktiled_est(rt_, tk_):
            w = 2 * ((F_in_p * tk_ + tk_ * F_out_p) * cb + 8 * tk_ * 4)  # k-varying
            w += 8 * F_out_p * 4                                         # invariant b2
            io = 2 * rt_ * (F_in_p * cb + F_out_p * ob)
            scratch = rt_ * (tk_ + F_out_p) * 4                          # f32 h + acc
            return w + io + scratch + headroom

        while tk > LANE and ktiled_est(rt, tk) > budget:
            tk = max(LANE, _round_up(tk // 2, LANE))
        while rt > ROW and ktiled_est(rt, tk) > budget:
            rt = max(ROW, _round_up(rt // 2, ROW))
        # Balance K blocks to bound F_hid padding.
        n_k = _cdiv(base_hid, tk)
        tk = _round_up(_cdiv(base_hid, n_k), LANE)
        F_hid_p = n_k * tk

    # ---- row blocking: bound padding waste; >=2 blocks feeds both v7x TCs ----
    N16 = _round_up(N, ROW)
    rt = min(rt, N16)
    n_blocks = _cdiv(N16, rt)
    if n_blocks == 1 and N16 >= 2 * LANE:
        n_blocks = 2
    rt = _round_up(_cdiv(N16, n_blocks), ROW)
    N_p = n_blocks * rt

    # ---- pad + cast (zero padding keeps the math exact) ----------------------
    xp = _pad_cast(x, N_p, F_in_p, compute_dtype)
    w1p = _pad_cast(w1, F_in_p, F_hid_p, compute_dtype)
    w2p = _pad_cast(w2, F_hid_p, F_out_p, compute_dtype)
    b1p = _pad_cast(b1, 1, F_hid_p, jnp.float32)
    b2p = _pad_cast(b2, 1, F_out_p, jnp.float32)

    cparams = pltpu.CompilerParams(
        dimension_semantics=("parallel",) if not use_k else ("parallel", "arbitrary"),
        vmem_limit_bytes=budget,
    )

    if not use_k:
        out_p = pl.pallas_call(
            _mlp_fused_kernel,
            out_shape=jax.ShapeDtypeStruct((N_p, F_out_p), out_dtype),
            grid_spec=pltpu.PrefetchScalarGridSpec(
                num_scalar_prefetch=0,
                grid=(n_blocks,),
                in_specs=[
                    pl.BlockSpec((rt, F_in_p), lambda i: (i, 0)),          # x tile
                    _inv_spec((F_in_p, F_hid_p), lambda i: (0, 0)),        # W1
                    _inv_spec((1, F_hid_p), lambda i: (0, 0)),             # b1 (f32)
                    _inv_spec((F_hid_p, F_out_p), lambda i: (0, 0)),       # W2
                    _inv_spec((1, F_out_p), lambda i: (0, 0)),             # b2 (f32)
                ],
                out_specs=pl.BlockSpec((rt, F_out_p), lambda i: (i, 0)),   # lane-dense
            ),
            compiler_params=cparams,
        )(xp, w1p, b1p, w2p, b2p)
    else:
        out_p = pl.pallas_call(
            _mlp_ktiled_kernel,
            out_shape=jax.ShapeDtypeStruct((N_p, F_out_p), out_dtype),
            grid_spec=pltpu.PrefetchScalarGridSpec(
                num_scalar_prefetch=0,
                grid=(n_blocks, n_k),
                in_specs=[
                    pl.BlockSpec((rt, F_in_p), lambda i, k: (i, 0)),       # x tile
                    pl.BlockSpec((F_in_p, tk), lambda i, k: (0, k)),       # W1[:, k]
                    pl.BlockSpec((1, tk), lambda i, k: (0, k)),            # b1[k]
                    pl.BlockSpec((tk, F_out_p), lambda i, k: (k, 0)),      # W2[k, :]
                    _inv_spec((1, F_out_p), lambda i, k: (0, 0)),          # b2
                ],
                out_specs=pl.BlockSpec((rt, F_out_p), lambda i, k: (i, 0)),
                scratch_shapes=[pltpu.VMEM((rt, F_out_p), jnp.float32)],   # f32 acc
            ),
            compiler_params=cparams,
        )(xp, w1p, b1p, w2p, b2p)

    if N_p == N and F_out_p == F_out:
        return out_p
    return out_p[:N, :F_out]       # strip row / feature padding (fused under jit)


_seq_mlp_jit = jax.jit(
    _seq_mlp_impl,
    static_argnames=("row_tile", "compute_dtype", "out_dtype", "k_tile",
                     "single_buffer_weights"))

_SINGLE_BUFFER_WEIGHTS = [True]


def seq_mlp(x, w1, b1, w2, b2, *, row_tile=256, compute_dtype=jnp.bfloat16,
            out_dtype=None, k_tile=None):
    """Fused Seq([Linear(in,hid), ReLU(), Linear(hid,out)]) forward on TPU."""
    kw = dict(row_tile=row_tile, compute_dtype=compute_dtype,
              out_dtype=out_dtype, k_tile=k_tile)
    if _SINGLE_BUFFER_WEIGHTS[0]:
        try:
            return _seq_mlp_jit(x, w1, b1, w2, b2,
                                single_buffer_weights=True, **kw)
        except Exception:
            # This toolchain rejected pl.Buffered(1) -> default double-buffering.
            _SINGLE_BUFFER_WEIGHTS[0] = False
    return _seq_mlp_jit(x, w1, b1, w2, b2, single_buffer_weights=False, **kw)


def _ref_bf16(x, w1, b1, w2, b2):
    """Pure-JAX reference matching the kernel's bf16-compute / f32-accumulate."""
    xb = x.astype(jnp.bfloat16)
    w1b = w1.astype(jnp.bfloat16)
    w2b = w2.astype(jnp.bfloat16)
    h = jnp.dot(xb, w1b, preferred_element_type=jnp.float32)
    h = jnp.maximum(h + b1.reshape(1, -1).astype(jnp.float32), 0.0)
    y = jnp.dot(h.astype(jnp.bfloat16), w2b, preferred_element_type=jnp.float32)
    return y + b2.reshape(1, -1).astype(jnp.float32)


if __name__ == "__main__":
    key = jax.random.PRNGKey(0)
    (k_x, k_w1, k_b1, k_w2, k_b2,
     k_x2, k_x3, k_w3, k_w4) = jax.random.split(key, 9)

    # Shapes consistent with Seq([Linear(32, 64), ReLU(), Linear(64, 32)]).
    N, F_in, F_hid, F_out = 16, 32, 64, 32
    x = jax.random.normal(k_x, (N, F_in), dtype=jnp.float32)
    s1 = 1.0 / (F_in ** 0.5)
    s2 = 1.0 / (F_hid ** 0.5)
    w1 = jax.random.uniform(k_w1, (F_in, F_hid), jnp.float32, -s1, s1)
    b1 = jax.random.uniform(k_b1, (1, F_hid), jnp.float32, -s1, s1)
    w2 = jax.random.uniform(k_w2, (F_hid, F_out), jnp.float32, -s2, s2)
    b2 = jax.random.uniform(k_b2, (1, F_out), jnp.float32, -s2, s2)

    out = jax.block_until_ready(seq_mlp(x, w1, b1, w2, b2))
    ref = _ref_bf16(x, w1, b1, w2, b2).astype(out.dtype)
    assert out.shape == (N, F_out)
    assert jnp.allclose(out, ref, atol=2e-2, rtol=2e-2), "mismatch (fused case)"
    ref_f32 = jnp.maximum(x @ w1 + b1, 0.0) @ w2 + b2
    assert jnp.allclose(out, ref_f32, atol=1e-1, rtol=1e-1), "mismatch vs f32 ref"

    # Ragged / unaligned N exercises the row-padding + slicing path.
    N2 = 50
    x2 = jax.random.normal(k_x2, (N2, F_in), dtype=jnp.float32)
    out2 = jax.block_until_ready(seq_mlp(x2, w1, b1, w2, b2))
    ref2 = _ref_bf16(x2, w1, b1, w2, b2).astype(out2.dtype)
    assert out2.shape == (N2, F_out)
    assert jnp.allclose(out2, ref2, atol=2e-2, rtol=2e-2), "mismatch (ragged case)"

    # Exercise the K-tiled (F_hid grid axis) path: 3 k-steps, 2 row blocks,
    # non-128-aligned feature dims.
    N3, F_in3, F_hid3, F_out3 = 300, 48, 300, 40
    x3 = jax.random.normal(k_x3, (N3, F_in3), dtype=jnp.float32)
    t1 = 1.0 / (F_in3 ** 0.5)
    t2 = 1.0 / (F_hid3 ** 0.5)
    w1b_ = jax.random.uniform(k_w3, (F_in3, F_hid3), jnp.float32, -t1, t1)
    b1b_ = jax.random.uniform(k_b1, (1, F_hid3), jnp.float32, -t1, t1)
    w2b_ = jax.random.uniform(k_w4, (F_hid3, F_out3), jnp.float32, -t2, t2)
    b2b_ = jax.random.uniform(k_b2, (1, F_out3), jnp.float32, -t2, t2)
    out3 = jax.block_until_ready(seq_mlp(x3, w1b_, b1b_, w2b_, b2b_, k_tile=128))
    ref3 = _ref_bf16(x3, w1b_, b1b_, w2b_, b2b_).astype(out3.dtype)
    assert out3.shape == (N3, F_out3)
    assert jnp.allclose(out3, ref3, atol=2e-2, rtol=2e-2), "mismatch (k-tiled case)"

    print("KERNEL_OK")
</pallas_src>

<mosaic_0001>
module attributes {stable_mosaic.version = 11 : i64} {
  func.func @_mlp_fused_kernel(%arg0: i32, %arg1: memref<16x128xbf16, #tpu.memory_space<vmem>>, %arg2: memref<128x128xbf16, #tpu.memory_space<vmem>>, %arg3: memref<1x128xf32, #tpu.memory_space<vmem>>, %arg4: memref<128x128xbf16, #tpu.memory_space<vmem>>, %arg5: memref<1x128xf32, #tpu.memory_space<vmem>>, %arg6: memref<16x128xf32, #tpu.memory_space<vmem>>) attributes {dimension_semantics = [#tpu.dimension_semantics<parallel>], iteration_bounds = array<i64: 1>, scalar_prefetch = 0 : i64, scratch_operands = 0 : i64, tpu.core_type = #tpu.core_type<tc>, window_params = [{transform_indices = @transform_0, window_bounds = array<i64: 16, 128>}, {pipeline_mode = #tpu.pipeline_mode<synchronous>, transform_indices = @transform_1, window_bounds = array<i64: 128, 128>}, {pipeline_mode = #tpu.pipeline_mode<synchronous>, transform_indices = @transform_2, window_bounds = array<i64: 1, 128>}, {pipeline_mode = #tpu.pipeline_mode<synchronous>, transform_indices = @transform_3, window_bounds = array<i64: 128, 128>}, {pipeline_mode = #tpu.pipeline_mode<synchronous>, transform_indices = @transform_4, window_bounds = array<i64: 1, 128>}, {transform_indices = @transform_5, window_bounds = array<i64: 16, 128>}]} {
    %c0 = arith.constant 0 : index
    %c0_0 = arith.constant 0 : index
    %0 = vector.load %arg1[%c0, %c0_0] : memref<16x128xbf16, #tpu.memory_space<vmem>>, vector<16x128xbf16>
    %c0_1 = arith.constant 0 : index
    %c0_2 = arith.constant 0 : index
    %1 = vector.load %arg2[%c0_1, %c0_2] : memref<128x128xbf16, #tpu.memory_space<vmem>>, vector<128x128xbf16>
    %cst = arith.constant dense<0.000000e+00> : vector<16x128xf32>
    %2 = tpu.matmul %0, %1, %cst {dimension_numbers = #tpu.dot_dimension_numbers<[1], [0], [0], [1], [0, 0, 1, 1], [], []>} : vector<16x128xbf16>, vector<128x128xbf16>, vector<16x128xf32> -> vector<16x128xf32>
    %c0_3 = arith.constant 0 : index
    %c0_4 = arith.constant 0 : index
    %3 = vector.load %arg3[%c0_3, %c0_4] : memref<1x128xf32, #tpu.memory_space<vmem>>, vector<1x128xf32>
    %4 = vector.broadcast %3 : vector<1x128xf32> to vector<16x128xf32>
    %5 = arith.addf %2, %4 : vector<16x128xf32>
    %cst_5 = arith.constant 0.000000e+00 : f32
    %6 = vector.broadcast %cst_5 : f32 to vector<16x128xf32>
    %7 = arith.maximumf %5, %6 : vector<16x128xf32>
    %8 = arith.truncf %7 : vector<16x128xf32> to vector<16x128xbf16>
    %c0_6 = arith.constant 0 : index
    %c0_7 = arith.constant 0 : index
    %9 = vector.load %arg4[%c0_6, %c0_7] : memref<128x128xbf16, #tpu.memory_space<vmem>>, vector<128x128xbf16>
    %cst_8 = arith.constant dense<0.000000e+00> : vector<16x128xf32>
    %10 = tpu.matmul %8, %9, %cst_8 {dimension_numbers = #tpu.dot_dimension_numbers<[1], [0], [0], [1], [0, 0, 1, 1], [], []>} : vector<16x128xbf16>, vector<128x128xbf16>, vector<16x128xf32> -> vector<16x128xf32>
    %c0_9 = arith.constant 0 : index
    %c0_10 = arith.constant 0 : index
    %11 = vector.load %arg5[%c0_9, %c0_10] : memref<1x128xf32, #tpu.memory_space<vmem>>, vector<1x128xf32>
    %12 = vector.broadcast %11 : vector<1x128xf32> to vector<16x128xf32>
    %13 = arith.addf %10, %12 : vector<16x128xf32>
    %c0_11 = arith.constant 0 : index
    %c0_12 = arith.constant 0 : index
    %14 = vector.load %arg6[%c0_11, %c0_12] : memref<16x128xf32, #tpu.memory_space<vmem>>, vector<16x128xf32>
    tpu.vector_store %arg6[%c0_11, %c0_12], %13 {strides = array<i32>} : memref<16x128xf32, #tpu.memory_space<vmem>>, vector<16x128xf32>,
    return
  }
  func.func @transform_0(%arg0: i32) -> (i32, i32) {
    %c0_i32 = arith.constant 0 : i32
    %c0_i32_0 = arith.constant 0 : i32
    return %arg0, %c0_i32 : i32, i32
  }
  func.func @transform_1(%arg0: i32) -> (i32, i32) {
    %c0_i32 = arith.constant 0 : i32
    %c0_i32_0 = arith.constant 0 : i32
    %c0_i32_1 = arith.constant 0 : i32
    return %c0_i32, %c0_i32_0 : i32, i32
  }
  func.func @transform_2(%arg0: i32) -> (i32, i32) {
    %c0_i32 = arith.constant 0 : i32
    %c0_i32_0 = arith.constant 0 : i32
    %c0_i32_1 = arith.constant 0 : i32
    return %c0_i32, %c0_i32_0 : i32, i32
  }
  func.func @transform_3(%arg0: i32) -> (i32, i32) {
    %c0_i32 = arith.constant 0 : i32
    %c0_i32_0 = arith.constant 0 : i32
    %c0_i32_1 = arith.constant 0 : i32
    return %c0_i32, %c0_i32_0 : i32, i32
  }
  func.func @transform_4(%arg0: i32) -> (i32, i32) {
    %c0_i32 = arith.constant 0 : i32
    %c0_i32_0 = arith.constant 0 : i32
    %c0_i32_1 = arith.constant 0 : i32
    return %c0_i32, %c0_i32_0 : i32, i32
  }
  func.func @transform_5(%arg0: i32) -> (i32, i32) {
    %c0_i32 = arith.constant 0 : i32
    %c0_i32_0 = arith.constant 0 : i32
    return %arg0, %c0_i32 : i32, i32
  }
}

module attributes {stable_mosaic.version = 11 : i64} {
  func.func @_mlp_fused_kernel(%arg0: i32, %arg1: memref<16x128xbf16, #tpu.memory_space<vmem>>, %arg2: memref<128x128xbf16, #tpu.memory_space<vmem>>, %arg3: memref<1x128xf32, #tpu.memory_space<vmem>>, %arg4: memref<128x128xbf16, #tpu.memory_space<vmem>>, %arg5: memref<1x128xf32, #tpu.memory_space<vmem>>, %arg6: memref<16x128xf32, #tpu.memory_space<vmem>>) attributes {dimension_semantics = [#tpu.dimension_semantics<parallel>], iteration_bounds = array<i64: 1>, scalar_prefetch = 0 : i64, scratch_operands = 0 : i64, tpu.core_type = #tpu.core_type<tc>, window_params = [{transform_indices = @transform_0, window_bounds = array<i64: 16, 128>}, {pipeline_mode = #tpu.pipeline_mode<synchronous>, transform_indices = @transform_1, window_bounds = array<i64: 128, 128>}, {pipeline_mode = #tpu.pipeline_mode<synchronous>, transform_indices = @transform_2, window_bounds = array<i64: 1, 128>}, {pipeline_mode = #tpu.pipeline_mode<synchronous>, transform_indices = @transform_3, window_bounds = array<i64: 128, 128>}, {pipeline_mode = #tpu.pipeline_mode<synchronous>, transform_indices = @transform_4, window_bounds = array<i64: 1, 128>}, {transform_indices = @transform_5, window_bounds = array<i64: 16, 128>}]} {
    %c0 = arith.constant 0 : index
    %c0_0 = arith.constant 0 : index
    %0 = vector.load %arg1[%c0, %c0_0] : memref<16x128xbf16, #tpu.memory_space<vmem>>, vector<16x128xbf16>
    %c0_1 = arith.constant 0 : index
    %c0_2 = arith.constant 0 : index
    %1 = vector.load %arg2[%c0_1, %c0_2] : memref<128x128xbf16, #tpu.memory_space<vmem>>, vector<128x128xbf16>
    %cst = arith.constant dense<0.000000e+00> : vector<16x128xf32>
    %2 = tpu.matmul %0, %1, %cst {dimension_numbers = #tpu.dot_dimension_numbers<[1], [0], [0], [1], [0, 0, 1, 1], [], []>} : vector<16x128xbf16>, vector<128x128xbf16>, vector<16x128xf32> -> vector<16x128xf32>
    %c0_3 = arith.constant 0 : index
    %c0_4 = arith.constant 0 : index
    %3 = vector.load %arg3[%c0_3, %c0_4] : memref<1x128xf32, #tpu.memory_space<vmem>>, vector<1x128xf32>
    %4 = vector.broadcast %3 : vector<1x128xf32> to vector<16x128xf32>
    %5 = arith.addf %2, %4 : vector<16x128xf32>
    %cst_5 = arith.constant 0.000000e+00 : f32
    %6 = vector.broadcast %cst_5 : f32 to vector<16x128xf32>
    %7 = arith.maximumf %5, %6 : vector<16x128xf32>
    %8 = arith.truncf %7 : vector<16x128xf32> to vector<16x128xbf16>
    %c0_6 = arith.constant 0 : index
    %c0_7 = arith.constant 0 : index
    %9 = vector.load %arg4[%c0_6, %c0_7] : memref<128x128xbf16, #tpu.memory_space<vmem>>, vector<128x128xbf16>
    %cst_8 = arith.constant dense<0.000000e+00> : vector<16x128xf32>
    %10 = tpu.matmul %8, %9, %cst_8 {dimension_numbers = #tpu.dot_dimension_numbers<[1], [0], [0], [1], [0, 0, 1, 1], [], []>} : vector<16x128xbf16>, vector<128x128xbf16>, vector<16x128xf32> -> vector<16x128xf32>
    %c0_9 = arith.constant 0 : index
    %c0_10 = arith.constant 0 : index
    %11 = vector.load %arg5[%c0_9, %c0_10] : memref<1x128xf32, #tpu.memory_space<vmem>>, vector<1x128xf32>
    %12 = vector.broadcast %11 : vector<1x128xf32> to vector<16x128xf32>
    %13 = arith.addf %10, %12 : vector<16x128xf32>
    %c0_11 = arith.constant 0 : index
    %c0_12 = arith.constant 0 : index
    %14 = vector.load %arg6[%c0_11, %c0_12] : memref<16x128xf32, #tpu.memory_space<vmem>>, vector<16x128xf32>
    tpu.vector_store %arg6[%c0_11, %c0_12], %13 {strides = array<i32>} : memref<16x128xf32, #tpu.memory_space<vmem>>, vector<16x128xf32>,
    return
  }
  func.func @transform_0(%arg0: i32) -> (i32, i32) {
    %c0_i32 = arith.constant 0 : i32
    %c0_i32_0 = arith.constant 0 : i32
    return %arg0, %c0_i32 : i32, i32
  }
  func.func @transform_1(%arg0: i32) -> (i32, i32) {
    %c0_i32 = arith.constant 0 : i32
    %c0_i32_0 = arith.constant 0 : i32
    %c0_i32_1 = arith.constant 0 : i32
    return %c0_i32, %c0_i32_0 : i32, i32
  }
  func.func @transform_2(%arg0: i32) -> (i32, i32) {
    %c0_i32 = arith.constant 0 : i32
    %c0_i32_0 = arith.constant 0 : i32
    %c0_i32_1 = arith.constant 0 : i32
    return %c0_i32, %c0_i32_0 : i32, i32
  }
  func.func @transform_3(%arg0: i32) -> (i32, i32) {
    %c0_i32 = arith.constant 0 : i32
    %c0_i32_0 = arith.constant 0 : i32
    %c0_i32_1 = arith.constant 0 : i32
    return %c0_i32, %c0_i32_0 : i32, i32
  }
  func.func @transform_4(%arg0: i32) -> (i32, i32) {
    %c0_i32 = arith.constant 0 : i32
    %c0_i32_0 = arith.constant 0 : i32
    %c0_i32_1 = arith.constant 0 : i32
    return %c0_i32, %c0_i32_0 : i32, i32
  }
  func.func @transform_5(%arg0: i32) -> (i32, i32) {
    %c0_i32 = arith.constant 0 : i32
    %c0_i32_0 = arith.constant 0 : i32
    return %arg0, %c0_i32 : i32, i32
  }
}

</mosaic_0001>

<llo_original>
// kernel: _seq_mlp_impl.1
$region0: #{_seq_mlp_impl.1}
  #allocation0 [shape = 'u32[]', space=smem, size = 0x4, offset = 0x4, fixed_abs, tag = 'smem constant byte address 0x4 - core index']
  #allocation1 [shape = 'u32[144,128]{1,0:T(1,128)}', space=vmem, size = 0x12000, scoped, tag = 'internal scratch']
  %s0 = inlined_call_operand.vmem [shape: bf16[16,128], index: 0, kind: input, shape index: {}]
  %s1 = inlined_call_operand.vmem [shape: bf16[128,128], index: 1, kind: input, shape index: {}]
  %s2 = inlined_call_operand.vmem [shape: f32[1,128], index: 2, kind: input, shape index: {}]
  %s3 = inlined_call_operand.vmem [shape: bf16[128,128], index: 3, kind: input, shape index: {}]
  %s4 = inlined_call_operand.vmem [shape: f32[1,128], index: 4, kind: input, shape index: {}]
  %s5 = inlined_call_operand.hbm [shape: f32[16,128], index: 5, kind: output, shape index: {}]
  %s6 = sld [smem:[#allocation0]]
  $region30: #{_seq_mlp_impl.1} parent=0
    _
  %s8 = ssub.s32 1, %s6
  %s9 = scalar_select 0, %s8, %s6
  $region1: #{_seq_mlp_impl.1} parent=0
    #allocation2 [shape = 'u8[8192]{0}', space=vmem, size = 0x2000, scoped, tag = 'output window, operand 0, single buffered']
    #allocation3 [shape = 's32[1]{0}', space=sflag, size = 0x4, scoped, tag = 'scoped memory for _seq_mlp_impl.1']
    %10 = vsyncpa [#allocation3], 0
    // Predicated region
    $region2: #{_seq_mlp_impl.1} parent=1 // pred_check
      _
    $region3: #{_seq_mlp_impl.1} parent=1 // pred_check_branch
      %12 = sbr.rel (0) target = $region5
    $region4: #{_seq_mlp_impl.1} parent=1 // pred_region
      _
    $region5: #{_seq_mlp_impl.1} parent=1 // pred_fallthru
      _
    // Predicated region
    $region6: #{_seq_mlp_impl.1} parent=1 // pred_check
      _
    $region7: #{_seq_mlp_impl.1} parent=1 // pred_check_branch
      %14 = sbr.rel (0) target = $region9
    $region8: #{_seq_mlp_impl.1} parent=1 // pred_region
      _
    $region9: #{_seq_mlp_impl.1} parent=1 // pred_fallthru
      _
    // Predicated region
    $region10: #{_seq_mlp_impl.1} parent=1 // pred_check
      _
    $region11: #{_seq_mlp_impl.1} parent=1 // pred_check_branch
      %16 = sbr.rel (0) target = $region13
    $region12: #{_seq_mlp_impl.1} parent=1 // pred_region
      _
    $region13: #{_seq_mlp_impl.1} parent=1 // pred_fallthru
      _
    // Predicated region
    $region14: #{_seq_mlp_impl.1} parent=1 // pred_check
      _
    $region15: #{_seq_mlp_impl.1} parent=1 // pred_check_branch
      %18 = sbr.rel (0) target = $region17
    $region16: #{_seq_mlp_impl.1} parent=1 // pred_region
      _
    $region17: #{_seq_mlp_impl.1} parent=1 // pred_fallthru
      _
    // Predicated region
    $region18: #{_seq_mlp_impl.1} parent=1 // pred_check
      _
    $region19: #{_seq_mlp_impl.1} parent=1 // pred_check_branch
      %20 = sbr.rel (0) target = $region21
    $region20: #{_seq_mlp_impl.1} parent=1 // pred_region
      _
    $region21: #{_seq_mlp_impl.1} parent=1 // pred_fallthru
      _
    %v22 = vld [vmem:[%s0] sm:$0xf]
    %v23 = vld [vmem:[%s0 + $0x4] sm:$0xf]
    %v24 = vld [vmem:[%s1] sm:$0xf]
    %v25 = vld [vmem:[%s1 + $0x4] sm:$0xf]
    %v26 = vld [vmem:[%s1 + $0x8] sm:$0xf]
    %v27 = vld [vmem:[%s1 + $0xc] sm:$0xf]
    %v28 = vld [vmem:[%s1 + $0x10] sm:$0xf]
    %v29 = vld [vmem:[%s1 + $0x14] sm:$0xf]
    %v30 = vld [vmem:[%s1 + $0x18] sm:$0xf]
    %v31 = vld [vmem:[%s1 + $0x1c] sm:$0xf]
    %v32 = vld [vmem:[%s1 + $0x20] sm:$0xf]
    %v33 = vld [vmem:[%s1 + $0x24] sm:$0xf]
    %v34 = vld [vmem:[%s1 + $0x28] sm:$0xf]
    %v35 = vld [vmem:[%s1 + $0x2c] sm:$0xf]
    %v36 = vld [vmem:[%s1 + $0x30] sm:$0xf]
    %v37 = vld [vmem:[%s1 + $0x34] sm:$0xf]
    %v38 = vld [vmem:[%s1 + $0x38] sm:$0xf]
    %v39 = vld [vmem:[%s1 + $0x3c] sm:$0xf]
    %v40 = vld [vmem:[%s2] sm:$0x1]
    %v42 = vlaneseq
    %v43 = vshrl.u32 %v42, 7
    %v44 = vsub.s32 0, %v43
    %v45 = vrot.slane %v40, %v44
    %v49 = vunpack.c.l.b16 %v22
    %v50 = vunpack.c.l.b16 %v23
    %v51 = vpack.c.b16 %v50, %v49
    %v69 = vunpack.c.l.b16 %v24
    %v70 = vunpack.c.l.b16 %v25
    %v71 = vunpack.c.l.b16 %v26
    %v72 = vunpack.c.l.b16 %v27
    %v73 = vunpack.c.l.b16 %v28
    %v74 = vunpack.c.l.b16 %v29
    %v75 = vunpack.c.l.b16 %v30
    %v76 = vunpack.c.l.b16 %v31
    %v77 = vunpack.c.l.b16 %v32
    %v78 = vunpack.c.l.b16 %v33
    %v79 = vunpack.c.l.b16 %v34
    %v80 = vunpack.c.l.b16 %v35
    %v81 = vunpack.c.l.b16 %v36
    %v82 = vunpack.c.l.b16 %v37
    %v83 = vunpack.c.l.b16 %v38
    %v84 = vunpack.c.l.b16 %v39
    %v85 = vpack.c.b16 %v70, %v69
    %v86 = vpack.c.b16 %v72, %v71
    %v87 = vpack.c.b16 %v74, %v73
    %v88 = vpack.c.b16 %v76, %v75
    %v89 = vpack.c.b16 %v78, %v77
    %v90 = vpack.c.b16 %v80, %v79
    %v91 = vpack.c.b16 %v82, %v81
    %v92 = vpack.c.b16 %v84, %v83
    %101 = vmatprep.subr.bf16.mxu0 0
    %102 = vmatpush1.bf16.msra.mxu0 %v85
    %103 = vmatprep.subr.bf16.mxu0 0
    %104 = vmatpush1.bf16.msra.mxu0 %v86
    %105 = vmatprep.subr.bf16.mxu0 0
    %106 = vmatpush1.bf16.msra.mxu0 %v87
    %107 = vmatprep.subr.bf16.mxu0 0
    %108 = vmatpush1.bf16.msra.mxu0 %v88
    %109 = vmatprep.subr.bf16.mxu0 0
    %110 = vmatpush1.bf16.msra.mxu0 %v89
    %111 = vmatprep.subr.bf16.mxu0 0
    %112 = vmatpush1.bf16.msra.mxu0 %v90
    %113 = vmatprep.subr.bf16.mxu0 0
    %114 = vmatpush1.bf16.msra.mxu0 %v91
    %115 = vmatprep.subr.bf16.mxu0 0
    %116 = vmatpush1.bf16.msra.mxu0 %v92
    %117 = vmatprep.subr.bf16.mxu0 0
    %118 = vmatpush1.bf16.msra.mxu0 0
    %119 = vmatprep.subr.bf16.mxu0 0
    %120 = vmatpush1.bf16.msra.mxu0 0
    %121 = vmatprep.subr.bf16.mxu0 0
    %122 = vmatpush1.bf16.msra.mxu0 0
    %123 = vmatprep.subr.bf16.mxu0 0
    %124 = vmatpush1.bf16.msra.mxu0 0
    %125 = vmatprep.subr.bf16.mxu0 0
    %126 = vmatpush1.bf16.msra.mxu0 0
    %127 = vmatprep.subr.bf16.mxu0 0
    %128 = vmatpush1.bf16.msra.mxu0 0
    %129 = vmatprep.subr.bf16.mxu0 0
    %130 = vmatpush1.bf16.msra.mxu0 0
    %131 = vmatprep.subr.bf16.mxu0 0
    %132 = vmatpush1.bf16.msra.mxu0 0
    %133 = vmatprep.mubr.bf16.mxu0 0
    %134 = vmatmul.mubr.bf16.gmra.mrb[0].mxu0 %v51
    %v135 = vpop.f32.mrb[0].mxu0
    %v136 = vadd.f32 %v45, %v135
    %v137 = vpop.f32.mrb[0].mxu0
    %v138 = vpop.f32.mrb[0].mxu0
    %v139 = vadd.f32 %v45, %v138
    %v140 = vpop.f32.mrb[0].mxu0
    %141 = vdwg.mxu0
    %v142 = vmax.f32 %v136, 0.0
    %v143 = vmax.f32 %v139, 0.0
    %v144 = vpack.c.bf16 %v143, %v142
    %v145 = vld [vmem:[%s3] sm:$0xf]
    %v146 = vld [vmem:[%s3 + $0x4] sm:$0xf]
    %v147 = vld [vmem:[%s3 + $0x8] sm:$0xf]
    %v148 = vld [vmem:[%s3 + $0xc] sm:$0xf]
    %v149 = vld [vmem:[%s3 + $0x10] sm:$0xf]
    %v150 = vld [vmem:[%s3 + $0x14] sm:$0xf]
    %v151 = vld [vmem:[%s3 + $0x18] sm:$0xf]
    %v152 = vld [vmem:[%s3 + $0x1c] sm:$0xf]
    %v153 = vld [vmem:[%s3 + $0x20] sm:$0xf]
    %v154 = vld [vmem:[%s3 + $0x24] sm:$0xf]
    %v155 = vld [vmem:[%s3 + $0x28] sm:$0xf]
    %v156 = vld [vmem:[%s3 + $0x2c] sm:$0xf]
    %v157 = vld [vmem:[%s3 + $0x30] sm:$0xf]
    %v158 = vld [vmem:[%s3 + $0x34] sm:$0xf]
    %v159 = vld [vmem:[%s3 + $0x38] sm:$0xf]
    %v160 = vld [vmem:[%s3 + $0x3c] sm:$0xf]
    %v161 = vld [vmem:[%s4] sm:$0x1]
    %v163 = vlaneseq
    %v164 = vshrl.u32 %v163, 7
    %v165 = vsub.s32 0, %v164
    %v166 = vrot.slane %v161, %v165
    %v184 = vunpack.c.l.b16 %v145
    %v185 = vunpack.c.l.b16 %v146
    %v186 = vunpack.c.l.b16 %v147
    %v187 = vunpack.c.l.b16 %v148
    %v188 = vunpack.c.l.b16 %v149
    %v189 = vunpack.c.l.b16 %v150
    %v190 = vunpack.c.l.b16 %v151
    %v191 = vunpack.c.l.b16 %v152
    %v192 = vunpack.c.l.b16 %v153
    %v193 = vunpack.c.l.b16 %v154
    %v194 = vunpack.c.l.b16 %v155
    %v195 = vunpack.c.l.b16 %v156
    %v196 = vunpack.c.l.b16 %v157
    %v197 = vunpack.c.l.b16 %v158
    %v198 = vunpack.c.l.b16 %v159
    %v199 = vunpack.c.l.b16 %v160
    %v200 = vpack.c.b16 %v185, %v184
    %v201 = vpack.c.b16 %v187, %v186
    %v202 = vpack.c.b16 %v189, %v188
    %v203 = vpack.c.b16 %v191, %v190
    %v204 = vpack.c.b16 %v193, %v192
    %v205 = vpack.c.b16 %v195, %v194
    %v206 = vpack.c.b16 %v197, %v196
    %v207 = vpack.c.b16 %v199, %v198
    %216 = vmatprep.subr.bf16.mxu0 0
    %217 = vmatpush1.bf16.msra.mxu0 %v200
    %218 = vmatprep.subr.bf16.mxu0 0
    %219 = vmatpush1.bf16.msra.mxu0 %v201
    %220 = vmatprep.subr.bf16.mxu0 0
    %221 = vmatpush1.bf16.msra.mxu0 %v202
    %222 = vmatprep.subr.bf16.mxu0 0
    %223 = vmatpush1.bf16.msra.mxu0 %v203
    %224 = vmatprep.subr.bf16.mxu0 0
    %225 = vmatpush1.bf16.msra.mxu0 %v204
    %226 = vmatprep.subr.bf16.mxu0 0
    %227 = vmatpush1.bf16.msra.mxu0 %v205
    %228 = vmatprep.subr.bf16.mxu0 0
    %229 = vmatpush1.bf16.msra.mxu0 %v206
    %230 = vmatprep.subr.bf16.mxu0 0
    %231 = vmatpush1.bf16.msra.mxu0 %v207
    %232 = vmatprep.subr.bf16.mxu0 0
    %233 = vmatpush1.bf16.msra.mxu0 0
    %234 = vmatprep.subr.bf16.mxu0 0
    %235 = vmatpush1.bf16.msra.mxu0 0
    %236 = vmatprep.subr.bf16.mxu0 0
    %237 = vmatpush1.bf16.msra.mxu0 0
    %238 = vmatprep.subr.bf16.mxu0 0
    %239 = vmatpush1.bf16.msra.mxu0 0
    %240 = vmatprep.subr.bf16.mxu0 0
    %241 = vmatpush1.bf16.msra.mxu0 0
    %242 = vmatprep.subr.bf16.mxu0 0
    %243 = vmatpush1.bf16.msra.mxu0 0
    %244 = vmatprep.subr.bf16.mxu0 0
    %245 = vmatpush1.bf16.msra.mxu0 0
    %246 = vmatprep.subr.bf16.mxu0 0
    %247 = vmatpush1.bf16.msra.mxu0 0
    %248 = vmatprep.mubr.bf16.mxu0 0
    %249 = vmatmul.mubr.bf16.gmra.mrb[0].mxu0 %v144
    %v250 = vpop.f32.mrb[0].mxu0
    %v251 = vadd.f32 %v166, %v250
    %v252 = vpop.f32.mrb[0].mxu0
    %v253 = vpop.f32.mrb[0].mxu0
    %v254 = vadd.f32 %v166, %v253
    %v255 = vpop.f32.mrb[0].mxu0
    %256 = vdwg.mxu0
    %257 = vst [vmem:[#allocation2] sm:$0xff] %v251
    %258 = vst [vmem:[#allocation2 + $0x8] sm:$0xff] %v254
    // Predicated region
    $region22: #{_seq_mlp_impl.1} parent=1 // pred_check
      _
    $region23: #{_seq_mlp_impl.1} parent=1 // pred_check_branch
      %260 = sbr.rel (0) target = $region25
    $region24: #{_seq_mlp_impl.1} parent=1 // pred_region
      %s262 = ssub.s32 256, 256
      %263 = vsyncadd [#allocation3], %s262
      %s264 = sshll.u32 [#allocation2], 4
      %s265 = int_to_ptr.vmem [resolvable:$true] %s264
      %270 = dma.vmem_to_hbm [thread:$0]  %s265, 256, %s5, [#allocation3], 128, 128, 8
    $region25: #{_seq_mlp_impl.1} parent=1 // pred_fallthru
      _
    // Predicated region
    $region26: #{_seq_mlp_impl.1} parent=1 // pred_check
      _
    $region27: #{_seq_mlp_impl.1} parent=1 // pred_check_branch
      %272 = sbr.rel (0) target = $region29
    $region28: #{_seq_mlp_impl.1} parent=1 // pred_region
      %273 = dma.done [#allocation3], 256
    $region29: #{_seq_mlp_impl.1} parent=1 // pred_fallthru
      _
    %274 = vsyncpa [#allocation3], 1

// kernel: _seq_mlp_impl.1
$region0: #{_seq_mlp_impl.1}
  #allocation0 [shape = 'u32[]', space=smem, size = 0x4, offset = 0x4, fixed_abs, tag = 'smem constant byte address 0x4 - core index']
  #allocation1 [shape = 'u32[144,128]{1,0:T(1,128)}', space=vmem, size = 0x12000, scoped, tag = 'internal scratch']
  %s0 = inlined_call_operand.vmem [shape: bf16[16,128], index: 0, kind: input, shape index: {}]
  %s1 = inlined_call_operand.vmem [shape: bf16[128,128], index: 1, kind: input, shape index: {}]
  %s2 = inlined_call_operand.vmem [shape: f32[1,128], index: 2, kind: input, shape index: {}]
  %s3 = inlined_call_operand.vmem [shape: bf16[128,128], index: 3, kind: input, shape index: {}]
  %s4 = inlined_call_operand.vmem [shape: f32[1,128], index: 4, kind: input, shape index: {}]
  %s5 = inlined_call_operand.hbm [shape: f32[16,128], index: 5, kind: output, shape index: {}]
  %s6 = sld [smem:[#allocation0]]
  $region30: #{_seq_mlp_impl.1} parent=0
    _
  %s8 = ssub.s32 1, %s6
  %s9 = scalar_select 0, %s8, %s6
  $region1: #{_seq_mlp_impl.1} parent=0
    #allocation2 [shape = 'u8[8192]{0}', space=vmem, size = 0x2000, scoped, tag = 'output window, operand 0, single buffered']
    #allocation3 [shape = 's32[1]{0}', space=sflag, size = 0x4, scoped, tag = 'scoped memory for _seq_mlp_impl.1']
    %10 = vsyncpa [#allocation3], 0
    // Predicated region
    $region2: #{_seq_mlp_impl.1} parent=1 // pred_check
      _
    $region3: #{_seq_mlp_impl.1} parent=1 // pred_check_branch
      %12 = sbr.rel (0) target = $region5
    $region4: #{_seq_mlp_impl.1} parent=1 // pred_region
      _
    $region5: #{_seq_mlp_impl.1} parent=1 // pred_fallthru
      _
    // Predicated region
    $region6: #{_seq_mlp_impl.1} parent=1 // pred_check
      _
    $region7: #{_seq_mlp_impl.1} parent=1 // pred_check_branch
      %14 = sbr.rel (0) target = $region9
    $region8: #{_seq_mlp_impl.1} parent=1 // pred_region
      _
    $region9: #{_seq_mlp_impl.1} parent=1 // pred_fallthru
      _
    // Predicated region
    $region10: #{_seq_mlp_impl.1} parent=1 // pred_check
      _
    $region11: #{_seq_mlp_impl.1} parent=1 // pred_check_branch
      %16 = sbr.rel (0) target = $region13
    $region12: #{_seq_mlp_impl.1} parent=1 // pred_region
      _
    $region13: #{_seq_mlp_impl.1} parent=1 // pred_fallthru
      _
    // Predicated region
    $region14: #{_seq_mlp_impl.1} parent=1 // pred_check
      _
    $region15: #{_seq_mlp_impl.1} parent=1 // pred_check_branch
      %18 = sbr.rel (0) target = $region17
    $region16: #{_seq_mlp_impl.1} parent=1 // pred_region
      _
    $region17: #{_seq_mlp_impl.1} parent=1 // pred_fallthru
      _
    // Predicated region
    $region18: #{_seq_mlp_impl.1} parent=1 // pred_check
      _
    $region19: #{_seq_mlp_impl.1} parent=1 // pred_check_branch
      %20 = sbr.rel (0) target = $region21
    $region20: #{_seq_mlp_impl.1} parent=1 // pred_region
      _
    $region21: #{_seq_mlp_impl.1} parent=1 // pred_fallthru
      _
    %v22 = vld [vmem:[%s0] sm:$0xf]
    %v23 = vld [vmem:[%s0 + $0x4] sm:$0xf]
    %v24 = vld [vmem:[%s1] sm:$0xf]
    %v25 = vld [vmem:[%s1 + $0x4] sm:$0xf]
    %v26 = vld [vmem:[%s1 + $0x8] sm:$0xf]
    %v27 = vld [vmem:[%s1 + $0xc] sm:$0xf]
    %v28 = vld [vmem:[%s1 + $0x10] sm:$0xf]
    %v29 = vld [vmem:[%s1 + $0x14] sm:$0xf]
    %v30 = vld [vmem:[%s1 + $0x18] sm:$0xf]
    %v31 = vld [vmem:[%s1 + $0x1c] sm:$0xf]
    %v32 = vld [vmem:[%s1 + $0x20] sm:$0xf]
    %v33 = vld [vmem:[%s1 + $0x24] sm:$0xf]
    %v34 = vld [vmem:[%s1 + $0x28] sm:$0xf]
    %v35 = vld [vmem:[%s1 + $0x2c] sm:$0xf]
    %v36 = vld [vmem:[%s1 + $0x30] sm:$0xf]
    %v37 = vld [vmem:[%s1 + $0x34] sm:$0xf]
    %v38 = vld [vmem:[%s1 + $0x38] sm:$0xf]
    %v39 = vld [vmem:[%s1 + $0x3c] sm:$0xf]
    %v40 = vld [vmem:[%s2] sm:$0x1]
    %v42 = vlaneseq
    %v43 = vshrl.u32 %v42, 7
    %v44 = vsub.s32 0, %v43
    %v45 = vrot.slane %v40, %v44
    %v49 = vunpack.c.l.b16 %v22
    %v50 = vunpack.c.l.b16 %v23
    %v51 = vpack.c.b16 %v50, %v49
    %v69 = vunpack.c.l.b16 %v24
    %v70 = vunpack.c.l.b16 %v25
    %v71 = vunpack.c.l.b16 %v26
    %v72 = vunpack.c.l.b16 %v27
    %v73 = vunpack.c.l.b16 %v28
    %v74 = vunpack.c.l.b16 %v29
    %v75 = vunpack.c.l.b16 %v30
    %v76 = vunpack.c.l.b16 %v31
    %v77 = vunpack.c.l.b16 %v32
    %v78 = vunpack.c.l.b16 %v33
    %v79 = vunpack.c.l.b16 %v34
    %v80 = vunpack.c.l.b16 %v35
    %v81 = vunpack.c.l.b16 %v36
    %v82 = vunpack.c.l.b16 %v37
    %v83 = vunpack.c.l.b16 %v38
    %v84 = vunpack.c.l.b16 %v39
    %v85 = vpack.c.b16 %v70, %v69
    %v86 = vpack.c.b16 %v72, %v71
    %v87 = vpack.c.b16 %v74, %v73
    %v88 = vpack.c.b16 %v76, %v75
    %v89 = vpack.c.b16 %v78, %v77
    %v90 = vpack.c.b16 %v80, %v79
    %v91 = vpack.c.b16 %v82, %v81
    %v92 = vpack.c.b16 %v84, %v83
    %101 = vmatprep.subr.bf16.mxu0 0
    %102 = vmatpush1.bf16.msra.mxu0 %v85
    %103 = vmatprep.subr.bf16.mxu0 0
    %104 = vmatpush1.bf16.msra.mxu0 %v86
    %105 = vmatprep.subr.bf16.mxu0 0
    %106 = vmatpush1.bf16.msra.mxu0 %v87
    %107 = vmatprep.subr.bf16.mxu0 0
    %108 = vmatpush1.bf16.msra.mxu0 %v88
    %109 = vmatprep.subr.bf16.mxu0 0
    %110 = vmatpush1.bf16.msra.mxu0 %v89
    %111 = vmatprep.subr.bf16.mxu0 0
    %112 = vmatpush1.bf16.msra.mxu0 %v90
    %113 = vmatprep.subr.bf16.mxu0 0
    %114 = vmatpush1.bf16.msra.mxu0 %v91
    %115 = vmatprep.subr.bf16.mxu0 0
    %116 = vmatpush1.bf16.msra.mxu0 %v92
    %117 = vmatprep.subr.bf16.mxu0 0
    %118 = vmatpush1.bf16.msra.mxu0 0
    %119 = vmatprep.subr.bf16.mxu0 0
    %120 = vmatpush1.bf16.msra.mxu0 0
    %121 = vmatprep.subr.bf16.mxu0 0
    %122 = vmatpush1.bf16.msra.mxu0 0
    %123 = vmatprep.subr.bf16.mxu0 0
    %124 = vmatpush1.bf16.msra.mxu0 0
    %125 = vmatprep.subr.bf16.mxu0 0
    %126 = vmatpush1.bf16.msra.mxu0 0
    %127 = vmatprep.subr.bf16.mxu0 0
    %128 = vmatpush1.bf16.msra.mxu0 0
    %129 = vmatprep.subr.bf16.mxu0 0
    %130 = vmatpush1.bf16.msra.mxu0 0
    %131 = vmatprep.subr.bf16.mxu0 0
    %132 = vmatpush1.bf16.msra.mxu0 0
    %133 = vmatprep.mubr.bf16.mxu0 0
    %134 = vmatmul.mubr.bf16.gmra.mrb[0].mxu0 %v51
    %v135 = vpop.f32.mrb[0].mxu0
    %v136 = vadd.f32 %v45, %v135
    %v137 = vpop.f32.mrb[0].mxu0
    %v138 = vpop.f32.mrb[0].mxu0
    %v139 = vadd.f32 %v45, %v138
    %v140 = vpop.f32.mrb[0].mxu0
    %141 = vdwg.mxu0
    %v142 = vmax.f32 %v136, 0.0
    %v143 = vmax.f32 %v139, 0.0
    %v144 = vpack.c.bf16 %v143, %v142
    %v145 = vld [vmem:[%s3] sm:$0xf]
    %v146 = vld [vmem:[%s3 + $0x4] sm:$0xf]
    %v147 = vld [vmem:[%s3 + $0x8] sm:$0xf]
    %v148 = vld [vmem:[%s3 + $0xc] sm:$0xf]
    %v149 = vld [vmem:[%s3 + $0x10] sm:$0xf]
    %v150 = vld [vmem:[%s3 + $0x14] sm:$0xf]
    %v151 = vld [vmem:[%s3 + $0x18] sm:$0xf]
    %v152 = vld [vmem:[%s3 + $0x1c] sm:$0xf]
    %v153 = vld [vmem:[%s3 + $0x20] sm:$0xf]
    %v154 = vld [vmem:[%s3 + $0x24] sm:$0xf]
    %v155 = vld [vmem:[%s3 + $0x28] sm:$0xf]
    %v156 = vld [vmem:[%s3 + $0x2c] sm:$0xf]
    %v157 = vld [vmem:[%s3 + $0x30] sm:$0xf]
    %v158 = vld [vmem:[%s3 + $0x34] sm:$0xf]
    %v159 = vld [vmem:[%s3 + $0x38] sm:$0xf]
    %v160 = vld [vmem:[%s3 + $0x3c] sm:$0xf]
    %v161 = vld [vmem:[%s4] sm:$0x1]
    %v163 = vlaneseq
    %v164 = vshrl.u32 %v163, 7
    %v165 = vsub.s32 0, %v164
    %v166 = vrot.slane %v161, %v165
    %v184 = vunpack.c.l.b16 %v145
    %v185 = vunpack.c.l.b16 %v146
    %v186 = vunpack.c.l.b16 %v147
    %v187 = vunpack.c.l.b16 %v148
    %v188 = vunpack.c.l.b16 %v149
    %v189 = vunpack.c.l.b16 %v150
    %v190 = vunpack.c.l.b16 %v151
    %v191 = vunpack.c.l.b16 %v152
    %v192 = vunpack.c.l.b16 %v153
    %v193 = vunpack.c.l.b16 %v154
    %v194 = vunpack.c.l.b16 %v155
    %v195 = vunpack.c.l.b16 %v156
    %v196 = vunpack.c.l.b16 %v157
    %v197 = vunpack.c.l.b16 %v158
    %v198 = vunpack.c.l.b16 %v159
    %v199 = vunpack.c.l.b16 %v160
    %v200 = vpack.c.b16 %v185, %v184
    %v201 = vpack.c.b16 %v187, %v186
    %v202 = vpack.c.b16 %v189, %v188
    %v203 = vpack.c.b16 %v191, %v190
    %v204 = vpack.c.b16 %v193, %v192
    %v205 = vpack.c.b16 %v195, %v194
    %v206 = vpack.c.b16 %v197, %v196
    %v207 = vpack.c.b16 %v199, %v198
    %216 = vmatprep.subr.bf16.mxu0 0
    %217 = vmatpush1.bf16.msra.mxu0 %v200
    %218 = vmatprep.subr.bf16.mxu0 0
    %219 = vmatpush1.bf16.msra.mxu0 %v201
    %220 = vmatprep.subr.bf16.mxu0 0
    %221 = vmatpush1.bf16.msra.mxu0 %v202
    %222 = vmatprep.subr.bf16.mxu0 0
    %223 = vmatpush1.bf16.msra.mxu0 %v203
    %224 = vmatprep.subr.bf16.mxu0 0
    %225 = vmatpush1.bf16.msra.mxu0 %v204
    %226 = vmatprep.subr.bf16.mxu0 0
    %227 = vmatpush1.bf16.msra.mxu0 %v205
    %228 = vmatprep.subr.bf16.mxu0 0
    %229 = vmatpush1.bf16.msra.mxu0 %v206
    %230 = vmatprep.subr.bf16.mxu0 0
    %231 = vmatpush1.bf16.msra.mxu0 %v207
    %232 = vmatprep.subr.bf16.mxu0 0
    %233 = vmatpush1.bf16.msra.mxu0 0
    %234 = vmatprep.subr.bf16.mxu0 0
    %235 = vmatpush1.bf16.msra.mxu0 0
    %236 = vmatprep.subr.bf16.mxu0 0
    %237 = vmatpush1.bf16.msra.mxu0 0
    %238 = vmatprep.subr.bf16.mxu0 0
    %239 = vmatpush1.bf16.msra.mxu0 0
    %240 = vmatprep.subr.bf16.mxu0 0
    %241 = vmatpush1.bf16.msra.mxu0 0
    %242 = vmatprep.subr.bf16.mxu0 0
    %243 = vmatpush1.bf16.msra.mxu0 0
    %244 = vmatprep.subr.bf16.mxu0 0
    %245 = vmatpush1.bf16.msra.mxu0 0
    %246 = vmatprep.subr.bf16.mxu0 0
    %247 = vmatpush1.bf16.msra.mxu0 0
    %248 = vmatprep.mubr.bf16.mxu0 0
    %249 = vmatmul.mubr.bf16.gmra.mrb[0].mxu0 %v144
    %v250 = vpop.f32.mrb[0].mxu0
    %v251 = vadd.f32 %v166, %v250
    %v252 = vpop.f32.mrb[0].mxu0
    %v253 = vpop.f32.mrb[0].mxu0
    %v254 = vadd.f32 %v166, %v253
    %v255 = vpop.f32.mrb[0].mxu0
    %256 = vdwg.mxu0
    %257 = vst [vmem:[#allocation2] sm:$0xff] %v251
    %258 = vst [vmem:[#allocation2 + $0x8] sm:$0xff] %v254
    // Predicated region
    $region22: #{_seq_mlp_impl.1} parent=1 // pred_check
      _
    $region23: #{_seq_mlp_impl.1} parent=1 // pred_check_branch
      %260 = sbr.rel (0) target = $region25
    $region24: #{_seq_mlp_impl.1} parent=1 // pred_region
      %s262 = ssub.s32 256, 256
      %263 = vsyncadd [#allocation3], %s262
      %s264 = sshll.u32 [#allocation2], 4
      %s265 = int_to_ptr.vmem [resolvable:$true] %s264
      %270 = dma.vmem_to_hbm [thread:$0]  %s265, 256, %s5, [#allocation3], 128, 128, 8
    $region25: #{_seq_mlp_impl.1} parent=1 // pred_fallthru
      _
    // Predicated region
    $region26: #{_seq_mlp_impl.1} parent=1 // pred_check
      _
    $region27: #{_seq_mlp_impl.1} parent=1 // pred_check_branch
      %272 = sbr.rel (0) target = $region29
    $region28: #{_seq_mlp_impl.1} parent=1 // pred_region
      %273 = dma.done [#allocation3], 256
    $region29: #{_seq_mlp_impl.1} parent=1 // pred_fallthru
      _
    %274 = vsyncpa [#allocation3], 1

</llo_original>
